<compile_context>
chip_gen: v7x
topology: tpu7x:2x2x1
jax: 0.10.0
libtpu: 0.0.40
codegen_flags: <defaults>
</compile_context>

<pallas_src>
import functools

import jax
import jax.numpy as jnp
from jax.experimental import pallas as pl
from jax.experimental.pallas import tpu as pltpu


LANE = 128     # TPU vreg lane width
SUBLANE = 8    # TPU vreg sublane count


def _round_up(n, m):
    return ((n + m - 1) // m) * m


# ----------------------------- Pallas kernel ------------------------------ #

def _policy_kernel(x_ref, w_ref, b_ref, out_ref, *, d_pad, width):
    # x: (tb, d_pad) f32 -> bf16 for the MXU.
    # w_ref: (d_pad + 2*width, width) bf16 slab = [W1; W2(block-diag); Wheads].
    # b_ref: (8, width) f32, rows 0/1/2 = b1 / b2 / bh.
    x = x_ref[...].astype(w_ref.dtype)
    b = b_ref[...]

    w1 = w_ref[0:d_pad, :]
    w2 = w_ref[d_pad:d_pad + width, :]
    wh = w_ref[d_pad + width:d_pad + 2 * width, :]

    # fused layer 1: [actor | critic] = tanh(x @ [W1a | W1c] + [b1a | b1c])
    h1 = jnp.tanh(jnp.dot(x, w1, preferred_element_type=jnp.float32)
                  + b[0:1, :])
    # fused layer 2: block-diagonal matmul keeps the two trunks independent
    h2 = jnp.tanh(jnp.dot(h1.astype(w_ref.dtype), w2,
                          preferred_element_type=jnp.float32) + b[1:2, :])
    # fused heads: lanes [0, E) = logits (actor half), lane E = value (critic
    # half), remaining lanes zero padding -> one lane-dense unmasked store.
    out_ref[...] = (jnp.dot(h2.astype(w_ref.dtype), wh,
                            preferred_element_type=jnp.float32)
                    + b[2:3, :]).astype(out_ref.dtype)


# --------------------------- fused param packing --------------------------- #

def fuse_params(p, *, compute_dtype=jnp.bfloat16):
    """Pack all actor/critic/head weights into 2 lane-dense DMA slabs."""
    D, H = p["aw1"].shape
    E = p["pw"].shape[1]
    d_pad = _round_up(D, SUBLANE)
    width = max(_round_up(2 * H, LANE), _round_up(E + 1, LANE))

    # layer 1: (d_pad, width) — cols [0,H)=actor, [H,2H)=critic
    w1 = jnp.zeros((d_pad, width), jnp.float32)
    w1 = w1.at[:D, :H].set(p["aw1"]).at[:D, H:2 * H].set(p["cw1"])
    b1 = jnp.zeros((1, width), jnp.float32)
    b1 = b1.at[:, :H].set(p["ab1"]).at[:, H:2 * H].set(p["cb1"])

    # layer 2: block-diagonal (width, width)
    w2 = jnp.zeros((width, width), jnp.float32)
    w2 = w2.at[:H, :H].set(p["aw2"]).at[H:2 * H, H:2 * H].set(p["cw2"])
    b2 = jnp.zeros((1, width), jnp.float32)
    b2 = b2.at[:, :H].set(p["ab2"]).at[:, H:2 * H].set(p["cb2"])

    # heads: logits from actor half -> lanes [0,E); value from critic half -> lane E
    wh = jnp.zeros((width, width), jnp.float32)
    wh = wh.at[:H, :E].set(p["pw"]).at[H:2 * H, E:E + 1].set(p["clw"])
    bh = jnp.zeros((1, width), jnp.float32)
    bh = bh.at[:, :E].set(p["pb"]).at[:, E:E + 1].set(p["clb"])

    # one weight slab (bf16), one bias slab (f32, 8 rows for sublane alignment)
    w_slab = jnp.concatenate([w1, w2, wh], axis=0).astype(compute_dtype)
    b_slab = jnp.zeros((SUBLANE, width), jnp.float32)
    b_slab = b_slab.at[0:1].set(b1).at[1:2].set(b2).at[2:3].set(bh)

    return {"w": w_slab, "b": b_slab, "E": E, "D": D,
            "d_pad": d_pad, "width": width}


# ------------------------------ host wrapper ------------------------------- #

def policy_act_fused(x, fused, *, max_single_block_b=512, tile_b=1024,
                     out_dtype=jnp.float32):
    """Fused MLPBase + heads. Returns lane-dense (B, width) block:
    lanes [0,E) = logits, lane E = value, rest zero."""
    B, D = x.shape
    d_pad, width = fused["d_pad"], fused["width"]
    if D != d_pad:
        x = jnp.pad(x, ((0, 0), (0, d_pad - D)))

    kernel = functools.partial(_policy_kernel, d_pad=d_pad, width=width)
    args = (x, fused["w"], fused["b"])
    out_shape = jax.ShapeDtypeStruct((B, width), out_dtype)

    flops = 2 * B * (d_pad * width + 2 * width * width)
    bytes_accessed = (x.size * 4 + fused["w"].size * 2 + fused["b"].size * 4
                      + B * width * jnp.dtype(out_dtype).itemsize)
    cost = pl.CostEstimate(flops=flops, transcendentals=2 * B * width,
                           bytes_accessed=bytes_accessed)

    if B <= max_single_block_b:
        # Single invocation, no grid: all 3 operands are full-array VMEM
        # blocks; no pipeline prologue/epilogue, no double-buffered weights.
        out = pl.pallas_call(kernel, out_shape=out_shape,
                             cost_estimate=cost)(*args)
    else:
        # Large batches: tile over batch only; weights/biases stay resident.
        # pl.cdiv + Pallas block padding handles a ragged final tile;
        # "parallel" lets v7x shard the grid across both TensorCores.
        grid = (pl.cdiv(B, tile_b),)
        out = pl.pallas_call(
            kernel,
            out_shape=out_shape,
            grid_spec=pl.GridSpec(
                grid=grid,
                in_specs=[
                    pl.BlockSpec((tile_b, d_pad), lambda i: (i, 0)),
                    pl.BlockSpec(fused["w"].shape, lambda i: (0, 0)),
                    pl.BlockSpec(fused["b"].shape, lambda i: (0, 0)),
                ],
                out_specs=pl.BlockSpec((tile_b, width), lambda i: (i, 0)),
            ),
            compiler_params=pltpu.CompilerParams(
                dimension_semantics=("parallel",)),
            cost_estimate=cost,
        )(*args)
    return out


def policy_act(x, fused, **kw):
    """Matches Policy.act return signature (value, None, None, logits).
    Prefer policy_act_fused() downstream to avoid the wrapper slice copies."""
    out = policy_act_fused(x, fused, **kw)
    E = fused["E"]
    return out[:, E:E + 1], None, None, out[:, :E]


# ------------------------ deterministic param init ------------------------ #

def _orthogonal(key, shape, gain=1.0):
    """Deterministic orthogonal init, like nn.init.orthogonal_."""
    rows, cols = shape
    n = max(rows, cols)
    a = jax.random.normal(key, (n, n), dtype=jnp.float32)
    q, r = jnp.linalg.qr(a)
    d = jnp.diag(r)
    q = q * jnp.where(d >= 0, 1.0, -1.0)[None, :]
    return gain * q[:rows, :cols]


def make_params(key, num_inputs, hidden_size, num_envs):
    ks = jax.random.split(key, 8)
    g = jnp.sqrt(2.0)  # gain used by MLPBase (np.sqrt(2))
    # weights stored as (in, out) == transpose of torch Linear weight (out, in)
    return {
        "aw1": _orthogonal(ks[0], (hidden_size, num_inputs), g).T,
        "ab1": jnp.zeros((1, hidden_size), jnp.float32),
        "aw2": _orthogonal(ks[1], (hidden_size, hidden_size), g).T,
        "ab2": jnp.zeros((1, hidden_size), jnp.float32),
        "cw1": _orthogonal(ks[2], (hidden_size, num_inputs), g).T,
        "cb1": jnp.zeros((1, hidden_size), jnp.float32),
        "cw2": _orthogonal(ks[3], (hidden_size, hidden_size), g).T,
        "cb2": jnp.zeros((1, hidden_size), jnp.float32),
        "clw": _orthogonal(ks[4], (1, hidden_size), 1.0).T,
        "clb": jnp.zeros((1, 1), jnp.float32),
        # self.policy uses default nn.Linear init; synthetic deterministic init
        "pw": 0.05 * jax.random.normal(ks[5], (hidden_size, num_envs), jnp.float32),
        "pb": 0.05 * jax.random.normal(ks[6], (1, num_envs), jnp.float32),
    }


# ------------------------------- reference -------------------------------- #

def policy_act_ref(x, p):
    ha = jnp.tanh(x @ p["aw1"] + p["ab1"])
    ha = jnp.tanh(ha @ p["aw2"] + p["ab2"])
    hc = jnp.tanh(x @ p["cw1"] + p["cb1"])
    hc = jnp.tanh(hc @ p["cw2"] + p["cb2"])
    value = hc @ p["clw"] + p["clb"]
    logits = ha @ p["pw"] + p["pb"]
    return value, logits


# --------------------------------- main ------------------------------------ #

if __name__ == "__main__":
    B = 16          # batch (num parallel envs in the benchmark)
    D = 64          # obs feature dim (1-D obs -> MLPBase)
    H = 64          # MLPBase default hidden_size
    E = 16          # num_envs -> policy head width

    key = jax.random.PRNGKey(0)
    k_x, k_p = jax.random.split(key)
    x = jax.random.normal(k_x, (B, D), dtype=jnp.float32)
    # rnn_hxs / masks exist in the API but are unused on the non-recurrent path
    rnn_hxs = jnp.zeros((B, 1), jnp.float32)
    masks = jnp.ones((B, 1), jnp.float32)
    # TODO(synk): GRU recurrent path (_forward_gru) not implemented; MLPBase
    # defaults to recurrent=False so it is never exercised by Policy.act.

    params = make_params(k_p, D, H, E)
    fused = fuse_params(params)   # one-time 2-slab lane-dense bf16 packing

    value, _, _, logits = policy_act(x, fused)
    value = jax.block_until_ready(value)
    logits = jax.block_until_ready(logits)

    v_ref, l_ref = policy_act_ref(x, params)
    # bf16 MXU inputs (f32 accumulation) -> ~1e-2 relative error vs f32 ref.
    assert jnp.allclose(value, v_ref, rtol=5e-2, atol=5e-2)
    assert jnp.allclose(logits, l_ref, rtol=5e-2, atol=5e-2)

    print("KERNEL_OK")
</pallas_src>

<mosaic_0001>
module attributes {stable_mosaic.version = 11 : i64} {
  func.func @_policy_kernel(%arg0: memref<16x64xf32, #tpu.memory_space<vmem>>, %arg1: memref<320x128xbf16, #tpu.memory_space<vmem>>, %arg2: memref<8x128xf32, #tpu.memory_space<vmem>>, %arg3: memref<16x128xf32, #tpu.memory_space<vmem>>) attributes {dimension_semantics = [], scalar_prefetch = 0 : i64, scratch_operands = 0 : i64, tpu.core_type = #tpu.core_type<tc>} {
    %c0 = arith.constant 0 : index
    %c0_0 = arith.constant 0 : index
    %0 = vector.load %arg0[%c0, %c0_0] : memref<16x64xf32, #tpu.memory_space<vmem>>, vector<16x64xf32>
    %1 = arith.truncf %0 : vector<16x64xf32> to vector<16x64xbf16>
    %c0_1 = arith.constant 0 : index
    %c0_2 = arith.constant 0 : index
    %2 = vector.load %arg2[%c0_1, %c0_2] : memref<8x128xf32, #tpu.memory_space<vmem>>, vector<8x128xf32>
    %c0_3 = arith.constant 0 : index
    %c0_4 = arith.constant 0 : index
    %3 = vector.load %arg1[%c0_3, %c0_4] : memref<320x128xbf16, #tpu.memory_space<vmem>>, vector<64x128xbf16>
    %c64 = arith.constant 64 : index
    %c0_5 = arith.constant 0 : index
    %4 = vector.load %arg1[%c64, %c0_5] : memref<320x128xbf16, #tpu.memory_space<vmem>>, vector<128x128xbf16>
    %c192 = arith.constant 192 : index
    %c0_6 = arith.constant 0 : index
    %5 = vector.load %arg1[%c192, %c0_6] : memref<320x128xbf16, #tpu.memory_space<vmem>>, vector<128x128xbf16>
    %cst = arith.constant dense<0.000000e+00> : vector<16x128xf32>
    %6 = tpu.matmul %1, %3, %cst {dimension_numbers = #tpu.dot_dimension_numbers<[1], [0], [0], [1], [0, 0, 1, 1], [], []>} : vector<16x64xbf16>, vector<64x128xbf16>, vector<16x128xf32> -> vector<16x128xf32>
    %7 = vector.extract_strided_slice %2 {offsets = [0, 0], sizes = [1, 128], strides = [1, 1]} : vector<8x128xf32> to vector<1x128xf32>
    %8 = vector.broadcast %7 : vector<1x128xf32> to vector<16x128xf32>
    %9 = arith.addf %6, %8 : vector<16x128xf32>
    %10 = math.tanh %9 : vector<16x128xf32>
    %11 = arith.truncf %10 : vector<16x128xf32> to vector<16x128xbf16>
    %cst_7 = arith.constant dense<0.000000e+00> : vector<16x128xf32>
    %12 = tpu.matmul %11, %4, %cst_7 {dimension_numbers = #tpu.dot_dimension_numbers<[1], [0], [0], [1], [0, 0, 1, 1], [], []>} : vector<16x128xbf16>, vector<128x128xbf16>, vector<16x128xf32> -> vector<16x128xf32>
    %13 = vector.extract_strided_slice %2 {offsets = [1, 0], sizes = [1, 128], strides = [1, 1]} : vector<8x128xf32> to vector<1x128xf32>
    %14 = vector.broadcast %13 : vector<1x128xf32> to vector<16x128xf32>
    %15 = arith.addf %12, %14 : vector<16x128xf32>
    %16 = math.tanh %15 : vector<16x128xf32>
    %17 = arith.truncf %16 : vector<16x128xf32> to vector<16x128xbf16>
    %cst_8 = arith.constant dense<0.000000e+00> : vector<16x128xf32>
    %18 = tpu.matmul %17, %5, %cst_8 {dimension_numbers = #tpu.dot_dimension_numbers<[1], [0], [0], [1], [0, 0, 1, 1], [], []>} : vector<16x128xbf16>, vector<128x128xbf16>, vector<16x128xf32> -> vector<16x128xf32>
    %19 = vector.extract_strided_slice %2 {offsets = [2, 0], sizes = [1, 128], strides = [1, 1]} : vector<8x128xf32> to vector<1x128xf32>
    %20 = vector.broadcast %19 : vector<1x128xf32> to vector<16x128xf32>
    %21 = arith.addf %18, %20 : vector<16x128xf32>
    %c0_9 = arith.constant 0 : index
    %c0_10 = arith.constant 0 : index
    %22 = vector.load %arg3[%c0_9, %c0_10] : memref<16x128xf32, #tpu.memory_space<vmem>>, vector<16x128xf32>
    tpu.vector_store %arg3[%c0_9, %c0_10], %21 {strides = array<i32>} : memref<16x128xf32, #tpu.memory_space<vmem>>, vector<16x128xf32>,
    return
  }
}

</mosaic_0001>

<llo_original>
// kernel: tpu_custom_call.1
$region0: #{tpu_custom_call.1}
  #allocation0 [shape = 'u32[]', space=smem, size = 0x4, offset = 0x4, fixed_abs, tag = 'smem constant byte address 0x4 - core index']
  #allocation1 [shape = 'u32[144,128]{1,0:T(1,128)}', space=vmem, size = 0x12000, scoped, tag = 'internal scratch']
  %s0 = inlined_call_operand.hbm [shape: f32[16,64], index: 0, kind: input, shape index: {}]
  %s1 = inlined_call_operand.hbm [shape: bf16[320,128], index: 1, kind: input, shape index: {}]
  %s2 = inlined_call_operand.hbm [shape: f32[8,128], index: 2, kind: input, shape index: {}]
  %s3 = inlined_call_operand.hbm [shape: f32[16,128], index: 3, kind: output, shape index: {}]
  %s4 = sld [smem:[#allocation0]]
  $region34: #{tpu_custom_call.1} parent=0
    _
  %s6 = ssub.s32 1, %s4
  %s7 = scalar_select 0, %s6, %s4
  $region1: #{tpu_custom_call.1} parent=0
    #allocation2 [shape = 'u8[8192]{0}', space=vmem, size = 0x2000, scoped, tag = 'input window, operand 0, single buffered']
    #allocation3 [shape = 's32[1]{0}', space=sflag, size = 0x4, scoped, tag = 'scoped memory for tpu_custom_call.1']
    #allocation4 [shape = 's32[1]{0}', space=sflag, size = 0x4, scoped, tag = 'scoped memory for tpu_custom_call.1']
    #allocation5 [shape = 'u8[81920]{0}', space=vmem, size = 0x14000, scoped, tag = 'input window, operand 1, single buffered']
    #allocation6 [shape = 's32[1]{0}', space=sflag, size = 0x4, scoped, tag = 'scoped memory for tpu_custom_call.1']
    #allocation7 [shape = 'u8[4096]{0}', space=vmem, size = 0x1000, scoped, tag = 'input window, operand 2, single buffered']
    #allocation8 [shape = 'u8[8192]{0}', space=vmem, size = 0x2000, scoped, tag = 'output window, operand 0, single buffered']
    %8 = vsyncpa [#allocation3], 0
    %9 = vsyncpa [#allocation6], 0
    %10 = vsyncpa [#allocation4], 0
    // Predicated region
    $region2: #{tpu_custom_call.1} parent=1 // pred_check
      _
    $region3: #{tpu_custom_call.1} parent=1 // pred_check_branch
      %12 = sbr.rel (0) target = $region5
    $region4: #{tpu_custom_call.1} parent=1 // pred_region
      %s14 = ssub.s32 256, 256
      %15 = vsyncadd [#allocation3], %s14
      %s16 = sshll.u32 [#allocation2], 4
      %s17 = int_to_ptr.vmem [resolvable:$true] %s16
      %22 = dma.hbm_to_vmem [thread:$0]  %s0, 256, %s17, [#allocation3], 128, 128, 8
    $region5: #{tpu_custom_call.1} parent=1 // pred_fallthru
      _
    // Predicated region
    $region6: #{tpu_custom_call.1} parent=1 // pred_check
      _
    $region7: #{tpu_custom_call.1} parent=1 // pred_check_branch
      %24 = sbr.rel (0) target = $region9
    $region8: #{tpu_custom_call.1} parent=1 // pred_region
      %s26 = ssub.s32 2560, 2560
      %27 = vsyncadd [#allocation6], %s26
      %s28 = sshll.u32 [#allocation5], 4
      %s29 = int_to_ptr.vmem [resolvable:$true] %s28
      %34 = dma.hbm_to_vmem [thread:$0]  %s1, 2560, %s29, [#allocation6], 64, 64, 4
    $region9: #{tpu_custom_call.1} parent=1 // pred_fallthru
      _
    // Predicated region
    $region10: #{tpu_custom_call.1} parent=1 // pred_check
      _
    $region11: #{tpu_custom_call.1} parent=1 // pred_check_branch
      %36 = sbr.rel (0) target = $region13
    $region12: #{tpu_custom_call.1} parent=1 // pred_region
      %s38 = ssub.s32 128, 128
      %39 = vsyncadd [#allocation6], %s38
      %s41 = sshll.u32 [#allocation7], 4
      %s42 = int_to_ptr.vmem [resolvable:$true] %s41
      %44 = dma.hbm_to_vmem [thread:$0]  %s2, 128, %s42, [#allocation6]
    $region13: #{tpu_custom_call.1} parent=1 // pred_fallthru
      _
    // Predicated region
    $region14: #{tpu_custom_call.1} parent=1 // pred_check
      _
    $region15: #{tpu_custom_call.1} parent=1 // pred_check_branch
      %46 = sbr.rel (0) target = $region17
    $region16: #{tpu_custom_call.1} parent=1 // pred_region
      %47 = dma.done [#allocation3], 256
    $region17: #{tpu_custom_call.1} parent=1 // pred_fallthru
      _
    // Predicated region
    $region18: #{tpu_custom_call.1} parent=1 // pred_check
      _
    $region19: #{tpu_custom_call.1} parent=1 // pred_check_branch
      %49 = sbr.rel (0) target = $region21
    $region20: #{tpu_custom_call.1} parent=1 // pred_region
      %50 = dma.done [#allocation6], 2560
    $region21: #{tpu_custom_call.1} parent=1 // pred_fallthru
      _
    // Predicated region
    $region22: #{tpu_custom_call.1} parent=1 // pred_check
      _
    $region23: #{tpu_custom_call.1} parent=1 // pred_check_branch
      %52 = sbr.rel (0) target = $region25
    $region24: #{tpu_custom_call.1} parent=1 // pred_region
      %53 = dma.done [#allocation6], 128
    $region25: #{tpu_custom_call.1} parent=1 // pred_fallthru
      _
    %v55 = vld [vmem:[#allocation2] sm:$0xff]
    %v56 = vld [vmem:[#allocation2 + $0x8] sm:$0xff]
    %v57 = vpack.c.bf16 %v56, %v55
    %v58 = vld [vmem:[#allocation7] sm:$0xff]
    %v59 = vld [vmem:[#allocation5] sm:$0xf]
    %v60 = vld [vmem:[#allocation5 + $0x4] sm:$0xf]
    %v61 = vld [vmem:[#allocation5 + $0x8] sm:$0xf]
    %v62 = vld [vmem:[#allocation5 + $0xc] sm:$0xf]
    %v63 = vld [vmem:[#allocation5 + $0x10] sm:$0xf]
    %v64 = vld [vmem:[#allocation5 + $0x14] sm:$0xf]
    %v65 = vld [vmem:[#allocation5 + $0x18] sm:$0xf]
    %v66 = vld [vmem:[#allocation5 + $0x1c] sm:$0xf]
    %v67 = vld [vmem:[#allocation5 + $0x20] sm:$0xf]
    %v68 = vld [vmem:[#allocation5 + $0x24] sm:$0xf]
    %v69 = vld [vmem:[#allocation5 + $0x28] sm:$0xf]
    %v70 = vld [vmem:[#allocation5 + $0x2c] sm:$0xf]
    %v71 = vld [vmem:[#allocation5 + $0x30] sm:$0xf]
    %v72 = vld [vmem:[#allocation5 + $0x34] sm:$0xf]
    %v73 = vld [vmem:[#allocation5 + $0x38] sm:$0xf]
    %v74 = vld [vmem:[#allocation5 + $0x3c] sm:$0xf]
    %v75 = vld [vmem:[#allocation5 + $0x40] sm:$0xf]
    %v76 = vld [vmem:[#allocation5 + $0x44] sm:$0xf]
    %v77 = vld [vmem:[#allocation5 + $0x48] sm:$0xf]
    %v78 = vld [vmem:[#allocation5 + $0x4c] sm:$0xf]
    %v79 = vld [vmem:[#allocation5 + $0x50] sm:$0xf]
    %v80 = vld [vmem:[#allocation5 + $0x54] sm:$0xf]
    %v81 = vld [vmem:[#allocation5 + $0x58] sm:$0xf]
    %v82 = vld [vmem:[#allocation5 + $0x5c] sm:$0xf]
    %v83 = vld [vmem:[#allocation5 + $0x60] sm:$0xf]
    %v84 = vld [vmem:[#allocation5 + $0x64] sm:$0xf]
    %v85 = vld [vmem:[#allocation5 + $0x68] sm:$0xf]
    %v86 = vld [vmem:[#allocation5 + $0x6c] sm:$0xf]
    %v87 = vld [vmem:[#allocation5 + $0x70] sm:$0xf]
    %v88 = vld [vmem:[#allocation5 + $0x74] sm:$0xf]
    %v89 = vld [vmem:[#allocation5 + $0x78] sm:$0xf]
    %v90 = vld [vmem:[#allocation5 + $0x7c] sm:$0xf]
    %v91 = vld [vmem:[#allocation5 + $0x80] sm:$0xf]
    %v92 = vld [vmem:[#allocation5 + $0x84] sm:$0xf]
    %v93 = vld [vmem:[#allocation5 + $0x88] sm:$0xf]
    %v94 = vld [vmem:[#allocation5 + $0x8c] sm:$0xf]
    %v95 = vld [vmem:[#allocation5 + $0x90] sm:$0xf]
    %v96 = vld [vmem:[#allocation5 + $0x94] sm:$0xf]
    %v97 = vld [vmem:[#allocation5 + $0x98] sm:$0xf]
    %v98 = vld [vmem:[#allocation5 + $0x9c] sm:$0xf]
    %v99 = vlaneseq
    %v100 = vshrl.u32 %v99, 7
    %v101 = vsub.s32 0, %v100
    %v102 = vrot.slane %v58, %v101
    %v111 = vunpack.c.l.b16 %v59
    %v112 = vunpack.c.l.b16 %v60
    %v113 = vunpack.c.l.b16 %v61
    %v114 = vunpack.c.l.b16 %v62
    %v115 = vunpack.c.l.b16 %v63
    %v116 = vunpack.c.l.b16 %v64
    %v117 = vunpack.c.l.b16 %v65
    %v118 = vunpack.c.l.b16 %v66
    %v119 = vpack.c.b16 %v112, %v111
    %v120 = vpack.c.b16 %v114, %v113
    %v121 = vpack.c.b16 %v116, %v115
    %v122 = vpack.c.b16 %v118, %v117
    %vm127 = vcmask 523264
    %v129 = vsel %vm127, %v57, 0
    %131 = vmatprep.subr.bf16.mxu0 0
    %132 = vmatpush1.bf16.msra.mxu0 %v119
    %133 = vmatprep.subr.bf16.mxu0 0
    %134 = vmatpush1.bf16.msra.mxu0 %v120
    %135 = vmatprep.subr.bf16.mxu0 0
    %136 = vmatpush1.bf16.msra.mxu0 %v121
    %137 = vmatprep.subr.bf16.mxu0 0
    %138 = vmatpush1.bf16.msra.mxu0 %v122
    %139 = vmatprep.subr.bf16.mxu0 0
    %140 = vmatpush1.bf16.msra.mxu0 0
    %141 = vmatprep.subr.bf16.mxu0 0
    %142 = vmatpush1.bf16.msra.mxu0 0
    %143 = vmatprep.subr.bf16.mxu0 0
    %144 = vmatpush1.bf16.msra.mxu0 0
    %145 = vmatprep.subr.bf16.mxu0 0
    %146 = vmatpush1.bf16.msra.mxu0 0
    %147 = vmatprep.subr.bf16.mxu0 0
    %148 = vmatpush1.bf16.msra.mxu0 0
    %149 = vmatprep.subr.bf16.mxu0 0
    %150 = vmatpush1.bf16.msra.mxu0 0
    %151 = vmatprep.subr.bf16.mxu0 0
    %152 = vmatpush1.bf16.msra.mxu0 0
    %153 = vmatprep.subr.bf16.mxu0 0
    %154 = vmatpush1.bf16.msra.mxu0 0
    %155 = vmatprep.subr.bf16.mxu0 0
    %156 = vmatpush1.bf16.msra.mxu0 0
    %157 = vmatprep.subr.bf16.mxu0 0
    %158 = vmatpush1.bf16.msra.mxu0 0
    %159 = vmatprep.subr.bf16.mxu0 0
    %160 = vmatpush1.bf16.msra.mxu0 0
    %161 = vmatprep.subr.bf16.mxu0 0
    %162 = vmatpush1.bf16.msra.mxu0 0
    %163 = vmatprep.mubr.bf16.mxu0 0
    %164 = vmatmul.mubr.bf16.gmra.mrb[0].mxu0 %v129
    %v165 = vpop.f32.mrb[0].mxu0
    %v166 = vadd.f32 %v102, %v165
    %v167 = vpop.f32.mrb[0].mxu0
    %v168 = vpop.f32.mrb[0].mxu0
    %v169 = vadd.f32 %v102, %v168
    %v170 = vpop.f32.mrb[0].mxu0
    %171 = vdwg.mxu0
    %v172 = vtanh.pop %v166
    %v173 = vtanh.pop %v169
    %v174 = vpack.c.bf16 %v173, %v172
    %v175 = vlaneseq
    %v176 = vshrl.u32 %v175, 7
    %v177 = vsub.s32 1, %v176
    %v178 = vrot.slane %v58, %v177
    %v195 = vunpack.c.l.b16 %v67
    %v196 = vunpack.c.l.b16 %v68
    %v197 = vunpack.c.l.b16 %v69
    %v198 = vunpack.c.l.b16 %v70
    %v199 = vunpack.c.l.b16 %v71
    %v200 = vunpack.c.l.b16 %v72
    %v201 = vunpack.c.l.b16 %v73
    %v202 = vunpack.c.l.b16 %v74
    %v203 = vunpack.c.l.b16 %v75
    %v204 = vunpack.c.l.b16 %v76
    %v205 = vunpack.c.l.b16 %v77
    %v206 = vunpack.c.l.b16 %v78
    %v207 = vunpack.c.l.b16 %v79
    %v208 = vunpack.c.l.b16 %v80
    %v209 = vunpack.c.l.b16 %v81
    %v210 = vunpack.c.l.b16 %v82
    %v211 = vpack.c.b16 %v196, %v195
    %v212 = vpack.c.b16 %v198, %v197
    %v213 = vpack.c.b16 %v200, %v199
    %v214 = vpack.c.b16 %v202, %v201
    %v215 = vpack.c.b16 %v204, %v203
    %v216 = vpack.c.b16 %v206, %v205
    %v217 = vpack.c.b16 %v208, %v207
    %v218 = vpack.c.b16 %v210, %v209
    %227 = vmatprep.subr.bf16.mxu0 0
    %228 = vmatpush1.bf16.msra.mxu0 %v211
    %229 = vmatprep.subr.bf16.mxu0 0
    %230 = vmatpush1.bf16.msra.mxu0 %v212
    %231 = vmatprep.subr.bf16.mxu0 0
    %232 = vmatpush1.bf16.msra.mxu0 %v213
    %233 = vmatprep.subr.bf16.mxu0 0
    %234 = vmatpush1.bf16.msra.mxu0 %v214
    %235 = vmatprep.subr.bf16.mxu0 0
    %236 = vmatpush1.bf16.msra.mxu0 %v215
    %237 = vmatprep.subr.bf16.mxu0 0
    %238 = vmatpush1.bf16.msra.mxu0 %v216
    %239 = vmatprep.subr.bf16.mxu0 0
    %240 = vmatpush1.bf16.msra.mxu0 %v217
    %241 = vmatprep.subr.bf16.mxu0 0
    %242 = vmatpush1.bf16.msra.mxu0 %v218
    %243 = vmatprep.subr.bf16.mxu0 0
    %244 = vmatpush1.bf16.msra.mxu0 0
    %245 = vmatprep.subr.bf16.mxu0 0
    %246 = vmatpush1.bf16.msra.mxu0 0
    %247 = vmatprep.subr.bf16.mxu0 0
    %248 = vmatpush1.bf16.msra.mxu0 0
    %249 = vmatprep.subr.bf16.mxu0 0
    %250 = vmatpush1.bf16.msra.mxu0 0
    %251 = vmatprep.subr.bf16.mxu0 0
    %252 = vmatpush1.bf16.msra.mxu0 0
    %253 = vmatprep.subr.bf16.mxu0 0
    %254 = vmatpush1.bf16.msra.mxu0 0
    %255 = vmatprep.subr.bf16.mxu0 0
    %256 = vmatpush1.bf16.msra.mxu0 0
    %257 = vmatprep.subr.bf16.mxu0 0
    %258 = vmatpush1.bf16.msra.mxu0 0
    %259 = vmatprep.mubr.bf16.mxu0 0
    %260 = vmatmul.mubr.bf16.gmra.mrb[0].mxu0 %v174
    %v261 = vpop.f32.mrb[0].mxu0
    %v262 = vadd.f32 %v178, %v261
    %v263 = vpop.f32.mrb[0].mxu0
    %v264 = vpop.f32.mrb[0].mxu0
    %v265 = vadd.f32 %v178, %v264
    %v266 = vpop.f32.mrb[0].mxu0
    %267 = vdwg.mxu0
    %v268 = vtanh.pop %v262
    %v269 = vtanh.pop %v265
    %v270 = vpack.c.bf16 %v269, %v268
    %v271 = vlaneseq
    %v272 = vshrl.u32 %v271, 7
    %v273 = vsub.s32 2, %v272
    %v274 = vrot.slane %v58, %v273
    %v291 = vunpack.c.l.b16 %v83
    %v292 = vunpack.c.l.b16 %v84
    %v293 = vunpack.c.l.b16 %v85
    %v294 = vunpack.c.l.b16 %v86
    %v295 = vunpack.c.l.b16 %v87
    %v296 = vunpack.c.l.b16 %v88
    %v297 = vunpack.c.l.b16 %v89
    %v298 = vunpack.c.l.b16 %v90
    %v299 = vunpack.c.l.b16 %v91
    %v300 = vunpack.c.l.b16 %v92
    %v301 = vunpack.c.l.b16 %v93
    %v302 = vunpack.c.l.b16 %v94
    %v303 = vunpack.c.l.b16 %v95
    %v304 = vunpack.c.l.b16 %v96
    %v305 = vunpack.c.l.b16 %v97
    %v306 = vunpack.c.l.b16 %v98
    %v307 = vpack.c.b16 %v292, %v291
    %v308 = vpack.c.b16 %v294, %v293
    %v309 = vpack.c.b16 %v296, %v295
    %v310 = vpack.c.b16 %v298, %v297
    %v311 = vpack.c.b16 %v300, %v299
    %v312 = vpack.c.b16 %v302, %v301
    %v313 = vpack.c.b16 %v304, %v303
    %v314 = vpack.c.b16 %v306, %v305
    %323 = vmatprep.subr.bf16.mxu0 0
    %324 = vmatpush1.bf16.msra.mxu0 %v307
    %325 = vmatprep.subr.bf16.mxu0 0
    %326 = vmatpush1.bf16.msra.mxu0 %v308
    %327 = vmatprep.subr.bf16.mxu0 0
    %328 = vmatpush1.bf16.msra.mxu0 %v309
    %329 = vmatprep.subr.bf16.mxu0 0
    %330 = vmatpush1.bf16.msra.mxu0 %v310
    %331 = vmatprep.subr.bf16.mxu0 0
    %332 = vmatpush1.bf16.msra.mxu0 %v311
    %333 = vmatprep.subr.bf16.mxu0 0
    %334 = vmatpush1.bf16.msra.mxu0 %v312
    %335 = vmatprep.subr.bf16.mxu0 0
    %336 = vmatpush1.bf16.msra.mxu0 %v313
    %337 = vmatprep.subr.bf16.mxu0 0
    %338 = vmatpush1.bf16.msra.mxu0 %v314
    %339 = vmatprep.subr.bf16.mxu0 0
    %340 = vmatpush1.bf16.msra.mxu0 0
    %341 = vmatprep.subr.bf16.mxu0 0
    %342 = vmatpush1.bf16.msra.mxu0 0
    %343 = vmatprep.subr.bf16.mxu0 0
    %344 = vmatpush1.bf16.msra.mxu0 0
    %345 = vmatprep.subr.bf16.mxu0 0
    %346 = vmatpush1.bf16.msra.mxu0 0
    %347 = vmatprep.subr.bf16.mxu0 0
    %348 = vmatpush1.bf16.msra.mxu0 0
    %349 = vmatprep.subr.bf16.mxu0 0
    %350 = vmatpush1.bf16.msra.mxu0 0
    %351 = vmatprep.subr.bf16.mxu0 0
    %352 = vmatpush1.bf16.msra.mxu0 0
    %353 = vmatprep.subr.bf16.mxu0 0
    %354 = vmatpush1.bf16.msra.mxu0 0
    %355 = vmatprep.mubr.bf16.mxu0 0
    %356 = vmatmul.mubr.bf16.gmra.mrb[0].mxu0 %v270
    %v357 = vpop.f32.mrb[0].mxu0
    %v358 = vadd.f32 %v274, %v357
    %v359 = vpop.f32.mrb[0].mxu0
    %v360 = vpop.f32.mrb[0].mxu0
    %v361 = vadd.f32 %v274, %v360
    %v362 = vpop.f32.mrb[0].mxu0
    %363 = vdwg.mxu0
    %364 = vst [vmem:[#allocation8] sm:$0xff] %v358
    %365 = vst [vmem:[#allocation8 + $0x8] sm:$0xff] %v361
    // Predicated region
    $region26: #{tpu_custom_call.1} parent=1 // pred_check
      _
    $region27: #{tpu_custom_call.1} parent=1 // pred_check_branch
      %367 = sbr.rel (0) target = $region29
    $region28: #{tpu_custom_call.1} parent=1 // pred_region
      %s369 = ssub.s32 256, 256
      %370 = vsyncadd [#allocation4], %s369
      %s371 = sshll.u32 [#allocation8], 4
      %s372 = int_to_ptr.vmem [resolvable:$true] %s371
      %377 = dma.vmem_to_hbm [thread:$0]  %s372, 256, %s3, [#allocation4], 128, 128, 8
    $region29: #{tpu_custom_call.1} parent=1 // pred_fallthru
      _
    // Predicated region
    $region30: #{tpu_custom_call.1} parent=1 // pred_check
      _
    $region31: #{tpu_custom_call.1} parent=1 // pred_check_branch
      %379 = sbr.rel (0) target = $region33
    $region32: #{tpu_custom_call.1} parent=1 // pred_region
      %380 = dma.done [#allocation4], 256
    $region33: #{tpu_custom_call.1} parent=1 // pred_fallthru
      _
    %381 = vsyncpa [#allocation3], 1
    %382 = vsyncpa [#allocation6], 1
    %383 = vsyncpa [#allocation4], 1

</llo_original>
